<compile_context>
chip_gen: v7x
topology: tpu7x:2x2x1
jax: 0.10.0
libtpu: 0.0.40
codegen_flags: <defaults>
</compile_context>

<pallas_src>
import jax
import jax.numpy as jnp
from jax import lax
from jax.experimental import pallas as pl
from jax.experimental.pallas import tpu as pltpu


def _round_up(a, m):
    return -(-a // m) * m


def _vmem_capacity_bytes():
    """Physical VMEM of the local TPU generation (conservative fallback)."""
    try:
        cap = int(pltpu.get_tpu_info().vmem_capacity_bytes)
        if cap > 0:
            return cap
    except Exception:
        pass
    return 64 * 1024 * 1024            # v7x-sized fallback: always safe


def _budgets():
    """(per-input-buffer budget, vmem_limit_bytes) by generation."""
    cap = _vmem_capacity_bytes()
    if cap >= 128 * 1024 * 1024:       # v5e / v6e: 128 MiB physical VMEM
        return 16 * 1024 * 1024, 64 * 1024 * 1024
    # v7x: 64 MiB physical (32 MiB scoped default) -> keep double-buffered
    # streaming with headroom, do NOT port a v6e-sized config.
    return 8 * 1024 * 1024, 32 * 1024 * 1024


def _pick_blocks(N, C, HW, itemsize, budget):
    """Pick (block_n, block_c) so one (block_n, block_c, HW) tile fits budget."""
    sub = 8 if itemsize >= 4 else (16 if itemsize == 2 else 32)
    lanes = _round_up(HW, 128)

    def tile_bytes(bn, bc):
        return bn * _round_up(bc, sub) * lanes * itemsize

    # Channel block: divisor of C that is sublane-aligned (or the full C).
    cands = [d for d in range(1, C + 1)
             if C % d == 0 and (d % sub == 0 or d == C)]
    fitting = [d for d in cands if tile_bytes(1, d) <= budget]
    block_c = max(fitting) if fitting else min(cands)

    # Batch block: only once a whole image's channel stack fits, so small-C
    # layers still move multi-MiB tiles per grid step.
    block_n = 1
    if block_c == C:
        for d in range(1, N + 1):
            if N % d == 0 and tile_bytes(d, C) <= budget:
                block_n = d
    return block_n, block_c


def _channel_reduce(x_flat, *, block_n, block_c, block_hw, vmem_limit):
    """(N, C, HW) -> channel-sum (N, 1, HW) f32 and channel-max (N, 1, HW) f32."""
    N, C, HW = x_flat.shape

    def kernel(x_ref, sum_ref, max_ref):
        c = pl.program_id(2)
        x = x_ref[...].astype(jnp.float32)               # (bn, bc, bhw), f32 acc
        part_sum = jnp.sum(x, axis=1, keepdims=True)     # (bn, 1, bhw)
        part_max = jnp.max(x, axis=1, keepdims=True)

        @pl.when(c == 0)
        def _init():
            sum_ref[...] = part_sum
            max_ref[...] = part_max

        @pl.when(c > 0)
        def _accumulate():
            sum_ref[...] = sum_ref[...] + part_sum
            max_ref[...] = jnp.maximum(max_ref[...], part_max)

    return pl.pallas_call(
        kernel,
        out_shape=(jax.ShapeDtypeStruct((N, 1, HW), jnp.float32),
                   jax.ShapeDtypeStruct((N, 1, HW), jnp.float32)),
        grid_spec=pltpu.PrefetchScalarGridSpec(
            num_scalar_prefetch=0,
            grid=(N // block_n, HW // block_hw, C // block_c),
            in_specs=[pl.BlockSpec((block_n, block_c, block_hw),
                                   lambda n, s, c: (n, c, s))],
            out_specs=[pl.BlockSpec((block_n, 1, block_hw),
                                    lambda n, s, c: (n, 0, s)),
                       pl.BlockSpec((block_n, 1, block_hw),
                                    lambda n, s, c: (n, 0, s))],
        ),
        compiler_params=pltpu.CompilerParams(
            dimension_semantics=("parallel", "parallel", "arbitrary"),
            vmem_limit_bytes=vmem_limit,
        ),
    )(x_flat)


def _conv_sigmoid(w_flat, sum_hw, max_hw, out_dtype, *, vmem_limit):
    """Tiny epilogue: 3x3 'SAME' conv (2 -> 1 ch, SMEM weights) + sigmoid."""
    N, H, W = sum_hw.shape

    def kernel(w_ref, s_ref, m_ref, o_ref, pad_ref):
        # Zero-padded 2-plane scratch; memset is 2*(H+2)*(W+2) floats, which is
        # negligible next to the C*H*W channel reduction.
        pad_ref[...] = jnp.zeros_like(pad_ref)
        pad_ref[0:1, 1:H + 1, 1:W + 1] = s_ref[...]      # channel-sum plane
        pad_ref[1:2, 1:H + 1, 1:W + 1] = m_ref[...]      # channel-max plane

        # 2->1 channel 3x3 cross-correlation as 18 scalar-weighted shifted
        # planes on the VPU (MXU would be >99% padding here).
        acc = jnp.zeros((H, W), jnp.float32)
        for dy in range(3):
            for dx in range(3):
                acc = acc + w_ref[dy * 3 + dx] * pad_ref[0, dy:dy + H, dx:dx + W]
                acc = acc + w_ref[9 + dy * 3 + dx] * pad_ref[1, dy:dy + H, dx:dx + W]

        sig = 1.0 / (1.0 + jnp.exp(-acc))                # exp rides the EUP slot
        o_ref[...] = sig[None, None].astype(o_ref.dtype)

    return pl.pallas_call(
        kernel,
        out_shape=jax.ShapeDtypeStruct((N, 1, H, W), out_dtype),
        grid_spec=pltpu.PrefetchScalarGridSpec(
            num_scalar_prefetch=0,
            grid=(N,),
            in_specs=[
                pl.BlockSpec(memory_space=pltpu.MemorySpace.SMEM),   # (18,) weights
                pl.BlockSpec((1, H, W), lambda n: (n, 0, 0)),
                pl.BlockSpec((1, H, W), lambda n: (n, 0, 0)),
            ],
            out_specs=pl.BlockSpec((1, 1, H, W), lambda n: (n, 0, 0, 0)),
            scratch_shapes=[pltpu.VMEM((2, H + 2, W + 2), jnp.float32)],
        ),
        compiler_params=pltpu.CompilerParams(
            dimension_semantics=("parallel",),
            vmem_limit_bytes=vmem_limit,
        ),
    )(w_flat, sum_hw, max_hw)


def spatial_attention_forward(x_nchw, w, *, block_c=None, block_n=None):
    """x_nchw: (N, C, H, W), f32 or bf16.  w: (2, 3, 3) == conv1.weight[0]."""
    N, C, H, W = x_nchw.shape
    assert w.shape == (2, 3, 3)
    HW = H * W
    itemsize = jnp.dtype(x_nchw.dtype).itemsize

    in_budget, vmem_limit = _budgets()
    auto_n, auto_c = _pick_blocks(N, C, HW, itemsize, in_budget)
    block_c = auto_c if block_c is None else block_c
    block_n = auto_n if block_n is None else block_n
    assert C % block_c == 0 and N % block_n == 0
    assert block_c == C or block_c % 8 == 0, "channel block must be sublane-aligned"

    # v7x: if only one batch block is in flight, split the flattened spatial
    # axis into two lane-aligned bands so both TensorCores get work. No halo
    # is needed because the 3x3 conv runs in the separate epilogue kernel.
    n_hw_blk = 1
    if N // block_n == 1 and HW % 256 == 0 and HW >= 2048:
        n_hw_blk = 2
    block_hw = HW // n_hw_blk

    # Lane-dense channel reduction on the flattened view (free reshape for
    # contiguous NCHW): sums/maxes accumulated in resident f32 output blocks.
    x_flat = x_nchw.reshape(N, C, HW)
    sum_map, max_map = _channel_reduce(
        x_flat, block_n=block_n, block_c=block_c, block_hw=block_hw,
        vmem_limit=vmem_limit)

    # mean = sum / C folded into the avg-tap weights (conv is linear), so the
    # reduction kernel never needs a finalize pass over its outputs.
    w32 = jnp.asarray(w, jnp.float32)
    w_flat = jnp.concatenate(
        [w32[0].reshape(-1) / float(C), w32[1].reshape(-1)])     # (18,) -> SMEM

    return _conv_sigmoid(w_flat,
                         sum_map.reshape(N, H, W),
                         max_map.reshape(N, H, W),
                         x_nchw.dtype, vmem_limit=vmem_limit)


def reference_forward(x, w):
    """Pure-JAX reference with identical semantics (f32 math)."""
    xf = x.astype(jnp.float32)
    avg = jnp.mean(xf, axis=1, keepdims=True)
    mx = jnp.max(xf, axis=1, keepdims=True)
    h = jnp.concatenate([avg, mx], axis=1)                       # (N, 2, H, W)
    y = lax.conv_general_dilated(
        h, jnp.asarray(w, jnp.float32).reshape(1, 2, 3, 3),
        window_strides=(1, 1), padding=((1, 1), (1, 1)),
        dimension_numbers=("NCHW", "OIHW", "NCHW"))
    return jax.nn.sigmoid(y)


if __name__ == "__main__":
    key = jax.random.PRNGKey(0)
    N, C, H, W = 2, 16, 16, 16
    kx, kw = jax.random.split(key)
    x = jax.random.normal(kx, (N, C, H, W), jnp.float32)
    # nn.Conv2d(2, 1, 3, padding=1, bias=False).weight has shape (1, 2, 3, 3);
    # the single output channel is squeezed -> (2, 3, 3).
    w = 0.3 * jax.random.normal(kw, (2, 3, 3), jnp.float32)

    ref = reference_forward(x, w)

    # Auto block selection (whole C per step, batch-blocked -> single step).
    out = jax.block_until_ready(spatial_attention_forward(x, w))
    assert out.shape == (N, 1, H, W) and out.dtype == x.dtype
    assert bool(jnp.all(jnp.isfinite(out)))
    assert bool(jnp.allclose(out.astype(jnp.float32), ref, atol=1e-4, rtol=1e-4)), \
        float(jnp.max(jnp.abs(out.astype(jnp.float32) - ref)))

    # Forced channel blocking (block_c=8 -> 2 reduction steps) exercises the
    # running-sum / running-max accumulation on the "arbitrary" axis.
    out2 = jax.block_until_ready(
        spatial_attention_forward(x, w, block_c=8, block_n=1))
    assert bool(jnp.allclose(out2.astype(jnp.float32), ref, atol=1e-4, rtol=1e-4)), \
        float(jnp.max(jnp.abs(out2.astype(jnp.float32) - ref)))

    # Native bf16 ingest (halves HBM bytes on the bandwidth-bound reduction).
    x_bf = x.astype(jnp.bfloat16)
    ref_bf = reference_forward(x_bf, w)
    out_bf = jax.block_until_ready(spatial_attention_forward(x_bf, w))
    assert out_bf.dtype == jnp.bfloat16
    assert bool(jnp.allclose(out_bf.astype(jnp.float32), ref_bf, atol=2e-2)), \
        float(jnp.max(jnp.abs(out_bf.astype(jnp.float32) - ref_bf)))

    print("KERNEL_OK")
</pallas_src>

<mosaic_0001>
module attributes {stable_mosaic.version = 11 : i64} {
  func.func @kernel(%arg0: i32, %arg1: i32, %arg2: i32, %arg3: memref<2x16x256xf32, #tpu.memory_space<vmem>>, %arg4: memref<2x1x256xf32, #tpu.memory_space<vmem>>, %arg5: memref<2x1x256xf32, #tpu.memory_space<vmem>>) attributes {dimension_semantics = [#tpu.dimension_semantics<parallel>, #tpu.dimension_semantics<parallel>, #tpu.dimension_semantics<arbitrary>], iteration_bounds = array<i64: 1, 1, 1>, scalar_prefetch = 0 : i64, scratch_operands = 0 : i64, tpu.core_type = #tpu.core_type<tc>, window_params = [{transform_indices = @transform_0, window_bounds = array<i64: 2, 16, 256>}, {transform_indices = @transform_1, window_bounds = array<i64: 2, 1, 256>}, {transform_indices = @transform_2, window_bounds = array<i64: 2, 1, 256>}]} {
    %c0 = arith.constant 0 : index
    %c0_0 = arith.constant 0 : index
    %c0_1 = arith.constant 0 : index
    %0 = vector.load %arg3[%c0, %c0_0, %c0_1] : memref<2x16x256xf32, #tpu.memory_space<vmem>>, vector<2x16x256xf32>
    %cst = arith.constant dense<0.000000e+00> : vector<2x256xf32>
    %1 = vector.multi_reduction <add>, %0, %cst [1] : vector<2x16x256xf32> to vector<2x256xf32>
    %2 = vector.shape_cast %1 : vector<2x256xf32> to vector<2x1x256xf32>
    %cst_2 = arith.constant dense<0xFF800000> : vector<2x256xf32>
    %3 = vector.multi_reduction <maximumf>, %0, %cst_2 [1] : vector<2x16x256xf32> to vector<2x256xf32>
    %4 = vector.shape_cast %3 : vector<2x256xf32> to vector<2x1x256xf32>
    %c0_i32 = arith.constant 0 : i32
    %5 = arith.cmpi eq, %arg2, %c0_i32 : i32
    %6 = arith.extui %5 : i1 to i32
    %c0_i32_3 = arith.constant 0 : i32
    %7 = arith.cmpi ne, %6, %c0_i32_3 : i32
    scf.if %7 {
      %c0_6 = arith.constant 0 : index
      %c0_7 = arith.constant 0 : index
      %c0_8 = arith.constant 0 : index
      %11 = vector.load %arg4[%c0_6, %c0_7, %c0_8] : memref<2x1x256xf32, #tpu.memory_space<vmem>>, vector<2x1x256xf32>
      tpu.vector_store %arg4[%c0_6, %c0_7, %c0_8], %2 {strides = array<i32>} : memref<2x1x256xf32, #tpu.memory_space<vmem>>, vector<2x1x256xf32>,
      %c0_9 = arith.constant 0 : index
      %c0_10 = arith.constant 0 : index
      %c0_11 = arith.constant 0 : index
      %12 = vector.load %arg5[%c0_9, %c0_10, %c0_11] : memref<2x1x256xf32, #tpu.memory_space<vmem>>, vector<2x1x256xf32>
      tpu.vector_store %arg5[%c0_9, %c0_10, %c0_11], %4 {strides = array<i32>} : memref<2x1x256xf32, #tpu.memory_space<vmem>>, vector<2x1x256xf32>,
    } else {
    }
    %c0_i32_4 = arith.constant 0 : i32
    %8 = arith.cmpi sgt, %arg2, %c0_i32_4 : i32
    %9 = arith.extui %8 : i1 to i32
    %c0_i32_5 = arith.constant 0 : i32
    %10 = arith.cmpi ne, %9, %c0_i32_5 : i32
    scf.if %10 {
      %c0_6 = arith.constant 0 : index
      %c0_7 = arith.constant 0 : index
      %c0_8 = arith.constant 0 : index
      %11 = vector.load %arg4[%c0_6, %c0_7, %c0_8] : memref<2x1x256xf32, #tpu.memory_space<vmem>>, vector<2x1x256xf32>
      %12 = arith.addf %11, %2 : vector<2x1x256xf32>
      %c0_9 = arith.constant 0 : index
      %c0_10 = arith.constant 0 : index
      %c0_11 = arith.constant 0 : index
      %13 = vector.load %arg4[%c0_9, %c0_10, %c0_11] : memref<2x1x256xf32, #tpu.memory_space<vmem>>, vector<2x1x256xf32>
      tpu.vector_store %arg4[%c0_9, %c0_10, %c0_11], %12 {strides = array<i32>} : memref<2x1x256xf32, #tpu.memory_space<vmem>>, vector<2x1x256xf32>,
      %c0_12 = arith.constant 0 : index
      %c0_13 = arith.constant 0 : index
      %c0_14 = arith.constant 0 : index
      %14 = vector.load %arg5[%c0_12, %c0_13, %c0_14] : memref<2x1x256xf32, #tpu.memory_space<vmem>>, vector<2x1x256xf32>
      %15 = arith.maximumf %14, %4 : vector<2x1x256xf32>
      %c0_15 = arith.constant 0 : index
      %c0_16 = arith.constant 0 : index
      %c0_17 = arith.constant 0 : index
      %16 = vector.load %arg5[%c0_15, %c0_16, %c0_17] : memref<2x1x256xf32, #tpu.memory_space<vmem>>, vector<2x1x256xf32>
      tpu.vector_store %arg5[%c0_15, %c0_16, %c0_17], %15 {strides = array<i32>} : memref<2x1x256xf32, #tpu.memory_space<vmem>>, vector<2x1x256xf32>,
    } else {
    }
    return
  }
  func.func @transform_0(%arg0: i32, %arg1: i32, %arg2: i32) -> (i32, i32, i32) {
    %c0_i32 = arith.constant 0 : i32
    return %arg0, %arg2, %arg1 : i32, i32, i32
  }
  func.func @transform_1(%arg0: i32, %arg1: i32, %arg2: i32) -> (i32, i32, i32) {
    %c0_i32 = arith.constant 0 : i32
    %c0_i32_0 = arith.constant 0 : i32
    return %arg0, %c0_i32, %arg1 : i32, i32, i32
  }
  func.func @transform_2(%arg0: i32, %arg1: i32, %arg2: i32) -> (i32, i32, i32) {
    %c0_i32 = arith.constant 0 : i32
    %c0_i32_0 = arith.constant 0 : i32
    return %arg0, %c0_i32, %arg1 : i32, i32, i32
  }
}

</mosaic_0001>

<llo_original>
// kernel: tpu_custom_call.1
$region0: #{tpu_custom_call.1}
  #allocation0 [shape = 'u32[]', space=smem, size = 0x4, offset = 0x4, fixed_abs, tag = 'smem constant byte address 0x4 - core index']
  #allocation1 [shape = 'u32[144,128]{1,0:T(1,128)}', space=vmem, size = 0x12000, scoped, tag = 'internal scratch']
  %s0 = inlined_call_operand.hbm [shape: f32[2,16,256], index: 0, kind: input, shape index: {}]
  %s1 = inlined_call_operand.hbm [shape: f32[2,1,256], index: 1, kind: output, shape index: {0}]
  %s2 = inlined_call_operand.hbm [shape: f32[2,1,256], index: 2, kind: output, shape index: {1}]
  %3 = xla_tuple %s1, %s2
  %s4 = sld [smem:[#allocation0]]
  $region34: #{tpu_custom_call.1} parent=0
    _
  %s6 = ssub.s32 1, %s4
  %s7 = scalar_select 0, %s6, %s4
  $region1: #{tpu_custom_call.1} parent=0
    #allocation2 [shape = 'u8[32768]{0}', space=vmem, size = 0x8000, scoped, tag = 'input window, operand 0, single buffered']
    #allocation3 [shape = 's32[1]{0}', space=sflag, size = 0x4, scoped, tag = 'scoped memory for tpu_custom_call.1']
    #allocation4 [shape = 's32[1]{0}', space=sflag, size = 0x4, scoped, tag = 'scoped memory for tpu_custom_call.1']
    #allocation5 [shape = 'u8[2048]{0}', space=vmem, size = 0x800, scoped, tag = 'output window, operand 0, single buffered']
    #allocation6 [shape = 'u8[2048]{0}', space=vmem, size = 0x800, scoped, tag = 'output window, operand 1, single buffered']
    #allocation7 [shape = 's32[1]{0}', space=sflag, size = 0x4, scoped, tag = 'scoped memory for tpu_custom_call.1']
    %8 = vsyncpa [#allocation3], 0
    %9 = vsyncpa [#allocation4], 0
    %10 = vsyncpa [#allocation7], 0
    // Predicated region
    $region2: #{tpu_custom_call.1} parent=1 // pred_check
      _
    $region3: #{tpu_custom_call.1} parent=1 // pred_check_branch
      %12 = sbr.rel (0) target = $region5
    $region4: #{tpu_custom_call.1} parent=1 // pred_region
      %s14 = ssub.s32 1024, 1024
      %15 = vsyncadd [#allocation3], %s14
      %s16 = sshll.u32 [#allocation2], 4
      %s17 = int_to_ptr.vmem [resolvable:$true] %s16
      %22 = dma.hbm_to_vmem [thread:$0]  %s0, 1024, %s17, [#allocation3], 256, 256, 16
    $region5: #{tpu_custom_call.1} parent=1 // pred_fallthru
      _
    // Predicated region
    $region6: #{tpu_custom_call.1} parent=1 // pred_check
      _
    $region7: #{tpu_custom_call.1} parent=1 // pred_check_branch
      %24 = sbr.rel (0) target = $region9
    $region8: #{tpu_custom_call.1} parent=1 // pred_region
      %25 = dma.done [#allocation3], 1024
    $region9: #{tpu_custom_call.1} parent=1 // pred_fallthru
      _
    %v26 = vld [vmem:[#allocation2] sm:$0xff]
    %v27 = vld [vmem:[#allocation2 + $0x8] sm:$0xff]
    %v28 = vld [vmem:[#allocation2 + $0x10] sm:$0xff]
    %v29 = vld [vmem:[#allocation2 + $0x18] sm:$0xff]
    %v30 = vld [vmem:[#allocation2 + $0x20] sm:$0xff]
    %v31 = vld [vmem:[#allocation2 + $0x28] sm:$0xff]
    %v32 = vld [vmem:[#allocation2 + $0x30] sm:$0xff]
    %v33 = vld [vmem:[#allocation2 + $0x38] sm:$0xff]
    %v34 = vadd.f32 %v26, %v28
    %v35 = vrot.slane %v34, 4
    %v36 = vadd.f32 %v34, %v35
    %v37 = vrot.slane %v36, 2
    %v38 = vadd.f32 %v36, %v37
    %v39 = vrot.slane %v38, 1
    %v40 = vadd.f32 %v38, %v39
    %v41 = vadd.f32 %v27, %v29
    %v42 = vrot.slane %v41, 4
    %v43 = vadd.f32 %v41, %v42
    %v44 = vrot.slane %v43, 2
    %v45 = vadd.f32 %v43, %v44
    %v46 = vrot.slane %v45, 1
    %v47 = vadd.f32 %v45, %v46
    %v48 = vadd.f32 %v30, %v32
    %v49 = vrot.slane %v48, 4
    %v50 = vadd.f32 %v48, %v49
    %v51 = vrot.slane %v50, 2
    %v52 = vadd.f32 %v50, %v51
    %v53 = vrot.slane %v52, 1
    %v54 = vadd.f32 %v52, %v53
    %v55 = vadd.f32 %v31, %v33
    %v56 = vrot.slane %v55, 4
    %v57 = vadd.f32 %v55, %v56
    %v58 = vrot.slane %v57, 2
    %v59 = vadd.f32 %v57, %v58
    %v60 = vrot.slane %v59, 1
    %v61 = vadd.f32 %v59, %v60
    %v62 = vmax.f32 %v26, %v28
    %v63 = vrot.slane %v62, 4
    %v64 = vmax.f32 %v62, %v63
    %v65 = vrot.slane %v64, 2
    %v66 = vmax.f32 %v64, %v65
    %v67 = vrot.slane %v66, 1
    %v68 = vmax.f32 %v66, %v67
    %v69 = vmax.f32 %v27, %v29
    %v70 = vrot.slane %v69, 4
    %v71 = vmax.f32 %v69, %v70
    %v72 = vrot.slane %v71, 2
    %v73 = vmax.f32 %v71, %v72
    %v74 = vrot.slane %v73, 1
    %v75 = vmax.f32 %v73, %v74
    %v76 = vmax.f32 %v30, %v32
    %v77 = vrot.slane %v76, 4
    %v78 = vmax.f32 %v76, %v77
    %v79 = vrot.slane %v78, 2
    %v80 = vmax.f32 %v78, %v79
    %v81 = vrot.slane %v80, 1
    %v82 = vmax.f32 %v80, %v81
    %v83 = vmax.f32 %v31, %v33
    %v84 = vrot.slane %v83, 4
    %v85 = vmax.f32 %v83, %v84
    %v86 = vrot.slane %v85, 2
    %v87 = vmax.f32 %v85, %v86
    %v88 = vrot.slane %v87, 1
    %v89 = vmax.f32 %v87, %v88
    %p90 = scmp.eq.s32.totalorder 0, 0
    // Predicated region
    $region10: #{tpu_custom_call.1} parent=1 // pred_check
      %p91 = pneg %p90
    $region11: #{tpu_custom_call.1} parent=1 // pred_check_branch
      %93 = sbr.rel (%p91) target = $region13
    $region12: #{tpu_custom_call.1} parent=1 // pred_region
      %v98 = vcombine.low %v40, %v47
      %v100 = vunpack.c.l.s4 1966171168
      %v101 = vunpack.c.0.s8 %v100
      %v102 = vlaneseq
      %v103 = vshrl.u32 %v102, 7
      %v104 = vsub.s32 %v101, %v103
      %v105 = vrot.slane %v98, %v104
      %v107 = vunpack.c.l.s4 1966171168
      %v108 = vunpack.c.0.s8 %v107
      %v109 = vlaneseq
      %v110 = vshrl.u32 %v109, 7
      %v111 = vsub.s32 %v108, %v110
      %v112 = vrot.slane %v105, %v111
      %v113 = vcombine.low %v54, %v61
      %v115 = vunpack.c.l.s4 1966171168
      %v116 = vunpack.c.0.s8 %v115
      %v117 = vlaneseq
      %v118 = vshrl.u32 %v117, 7
      %v119 = vsub.s32 %v116, %v118
      %v120 = vrot.slane %v113, %v119
      %v122 = vunpack.c.l.s4 1966171168
      %v123 = vunpack.c.0.s8 %v122
      %v124 = vlaneseq
      %v125 = vshrl.u32 %v124, 7
      %v126 = vsub.s32 %v123, %v125
      %v127 = vrot.slane %v120, %v126
      %v130 = vlaneseq
      %vm131 = vcmp.ge.s32.totalorder %v130, 0
      %vm132 = vcmp.lt.s32.totalorder %v130, 256
      %vm133 = vmand %vm131, %vm132
      %134 = vst.msk [vmem:[#allocation5] sm:$0x3] %vm133, %v112
      %135 = vst.msk [vmem:[#allocation5 + $0x2] sm:$0x3] %vm133, %v127
      %v140 = vcombine.low %v68, %v75
      %v142 = vunpack.c.l.s4 1966171168
      %v143 = vunpack.c.0.s8 %v142
      %v144 = vlaneseq
      %v145 = vshrl.u32 %v144, 7
      %v146 = vsub.s32 %v143, %v145
      %v147 = vrot.slane %v140, %v146
      %v149 = vunpack.c.l.s4 1966171168
      %v150 = vunpack.c.0.s8 %v149
      %v151 = vlaneseq
      %v152 = vshrl.u32 %v151, 7
      %v153 = vsub.s32 %v150, %v152
      %v154 = vrot.slane %v147, %v153
      %v155 = vcombine.low %v82, %v89
      %v157 = vunpack.c.l.s4 1966171168
      %v158 = vunpack.c.0.s8 %v157
      %v159 = vlaneseq
      %v160 = vshrl.u32 %v159, 7
      %v161 = vsub.s32 %v158, %v160
      %v162 = vrot.slane %v155, %v161
      %v164 = vunpack.c.l.s4 1966171168
      %v165 = vunpack.c.0.s8 %v164
      %v166 = vlaneseq
      %v167 = vshrl.u32 %v166, 7
      %v168 = vsub.s32 %v165, %v167
      %v169 = vrot.slane %v162, %v168
      %172 = vst.msk [vmem:[#allocation6] sm:$0x3] %vm133, %v154
      %173 = vst.msk [vmem:[#allocation6 + $0x2] sm:$0x3] %vm133, %v169
    $region13: #{tpu_custom_call.1} parent=1 // pred_fallthru
      _
    %p174 = scmp.gt.s32.totalorder 0, 0
    // Predicated region
    $region14: #{tpu_custom_call.1} parent=1 // pred_check
      %p175 = pneg %p174
    $region15: #{tpu_custom_call.1} parent=1 // pred_check_branch
      %177 = sbr.rel (%p175) target = $region17
    $region16: #{tpu_custom_call.1} parent=1 // pred_region
      %v178 = vld [vmem:[#allocation5] sm:$0x3]
      %v179 = vld [vmem:[#allocation5 + $0x2] sm:$0x3]
      %v184 = vcombine.low %v40, %v47
      %v186 = vunpack.c.l.s4 1966171168
      %v187 = vunpack.c.0.s8 %v186
      %v188 = vlaneseq
      %v189 = vshrl.u32 %v188, 7
      %v190 = vsub.s32 %v187, %v189
      %v191 = vrot.slane %v184, %v190
      %v193 = vunpack.c.l.s4 1966171168
      %v194 = vunpack.c.0.s8 %v193
      %v195 = vlaneseq
      %v196 = vshrl.u32 %v195, 7
      %v197 = vsub.s32 %v194, %v196
      %v198 = vrot.slane %v191, %v197
      %v199 = vcombine.low %v54, %v61
      %v201 = vunpack.c.l.s4 1966171168
      %v202 = vunpack.c.0.s8 %v201
      %v203 = vlaneseq
      %v204 = vshrl.u32 %v203, 7
      %v205 = vsub.s32 %v202, %v204
      %v206 = vrot.slane %v199, %v205
      %v208 = vunpack.c.l.s4 1966171168
      %v209 = vunpack.c.0.s8 %v208
      %v210 = vlaneseq
      %v211 = vshrl.u32 %v210, 7
      %v212 = vsub.s32 %v209, %v211
      %v213 = vrot.slane %v206, %v212
      %v216 = vadd.f32 %v178, %v198
      %v217 = vadd.f32 %v179, %v213
      %v218 = vlaneseq
      %vm219 = vcmp.ge.s32.totalorder %v218, 0
      %vm220 = vcmp.lt.s32.totalorder %v218, 256
      %vm221 = vmand %vm219, %vm220
      %222 = vst.msk [vmem:[#allocation5] sm:$0x3] %vm221, %v216
      %223 = vst.msk [vmem:[#allocation5 + $0x2] sm:$0x3] %vm221, %v217
      %v224 = vld [vmem:[#allocation6] sm:$0x3]
      %v225 = vld [vmem:[#allocation6 + $0x2] sm:$0x3]
      %v230 = vcombine.low %v68, %v75
      %v232 = vunpack.c.l.s4 1966171168
      %v233 = vunpack.c.0.s8 %v232
      %v234 = vlaneseq
      %v235 = vshrl.u32 %v234, 7
      %v236 = vsub.s32 %v233, %v235
      %v237 = vrot.slane %v230, %v236
      %v239 = vunpack.c.l.s4 1966171168
      %v240 = vunpack.c.0.s8 %v239
      %v241 = vlaneseq
      %v242 = vshrl.u32 %v241, 7
      %v243 = vsub.s32 %v240, %v242
      %v244 = vrot.slane %v237, %v243
      %v245 = vcombine.low %v82, %v89
      %v247 = vunpack.c.l.s4 1966171168
      %v248 = vunpack.c.0.s8 %v247
      %v249 = vlaneseq
      %v250 = vshrl.u32 %v249, 7
      %v251 = vsub.s32 %v248, %v250
      %v252 = vrot.slane %v245, %v251
      %v254 = vunpack.c.l.s4 1966171168
      %v255 = vunpack.c.0.s8 %v254
      %v256 = vlaneseq
      %v257 = vshrl.u32 %v256, 7
      %v258 = vsub.s32 %v255, %v257
      %v259 = vrot.slane %v252, %v258
      %v262 = vmax.f32 %v224, %v244
      %v263 = vmax.f32 %v225, %v259
      %264 = vst.msk [vmem:[#allocation6] sm:$0x3] %vm221, %v262
      %265 = vst.msk [vmem:[#allocation6 + $0x2] sm:$0x3] %vm221, %v263
    $region17: #{tpu_custom_call.1} parent=1 // pred_fallthru
      _
    // Predicated region
    $region18: #{tpu_custom_call.1} parent=1 // pred_check
      _
    $region19: #{tpu_custom_call.1} parent=1 // pred_check_branch
      %267 = sbr.rel (0) target = $region21
    $region20: #{tpu_custom_call.1} parent=1 // pred_region
      %s269 = ssub.s32 64, 64
      %270 = vsyncadd [#allocation4], %s269
      %s271 = sshll.u32 [#allocation5], 4
      %s272 = int_to_ptr.vmem [resolvable:$true] %s271
      %277 = dma.vmem_to_hbm [thread:$0]  %s272, 64, %s1, [#allocation4], 32, 32, 2
    $region21: #{tpu_custom_call.1} parent=1 // pred_fallthru
      _
    // Predicated region
    $region22: #{tpu_custom_call.1} parent=1 // pred_check
      _
    $region23: #{tpu_custom_call.1} parent=1 // pred_check_branch
      %279 = sbr.rel (0) target = $region25
    $region24: #{tpu_custom_call.1} parent=1 // pred_region
      %s281 = ssub.s32 64, 64
      %282 = vsyncadd [#allocation7], %s281
      %s283 = sshll.u32 [#allocation6], 4
      %s284 = int_to_ptr.vmem [resolvable:$true] %s283
      %289 = dma.vmem_to_hbm [thread:$0]  %s284, 64, %s2, [#allocation7], 32, 32, 2
    $region25: #{tpu_custom_call.1} parent=1 // pred_fallthru
      _
    // Predicated region
    $region26: #{tpu_custom_call.1} parent=1 // pred_check
      _
    $region27: #{tpu_custom_call.1} parent=1 // pred_check_branch
      %291 = sbr.rel (0) target = $region29
    $region28: #{tpu_custom_call.1} parent=1 // pred_region
      %292 = dma.done [#allocation4], 64
    $region29: #{tpu_custom_call.1} parent=1 // pred_fallthru
      _
    // Predicated region
    $region30: #{tpu_custom_call.1} parent=1 // pred_check
      _
    $region31: #{tpu_custom_call.1} parent=1 // pred_check_branch
      %294 = sbr.rel (0) target = $region33
    $region32: #{tpu_custom_call.1} parent=1 // pred_region
      %295 = dma.done [#allocation7], 64
    $region33: #{tpu_custom_call.1} parent=1 // pred_fallthru
      _
    %296 = vsyncpa [#allocation3], 1
    %297 = vsyncpa [#allocation4], 1
    %298 = vsyncpa [#allocation7], 1

</llo_original>
